<compile_context>
chip_gen: v6e
topology: v6e:2x2x1
jax: 0.10.0
libtpu: 0.0.40
codegen_flags: <defaults>
</compile_context>

<pallas_src>
import functools
import math

import jax
import jax.numpy as jnp
from jax import lax
from jax.experimental import pallas as pl
from jax.experimental.pallas import tpu as pltpu


def _round_up(x: int, m: int) -> int:
    return ((x + m - 1) // m) * m


def _contrastive_embed_kernel(v_ref, p_ref, mb_ref, o_ref, *, scale):
    # v_ref : (1, TQ, D)   bf16   visual-query tile
    # p_ref : (1, TN, D)   bf16   prompt-token tile
    # mb_ref: (1, 1, TN)   f32    fused mask+bias row (bias_value or -inf)
    # o_ref : (1, TQ, TN)  f32    logits tile
    v = v_ref[0]            # (TQ, D)
    p = p_ref[0]            # (TN, D)
    # visual @ prompt^T : contract over D (last axis of both). The q.k^T
    # pattern is handled natively by the MXU weight load (no XLU transpose).
    acc = lax.dot_general(
        v, p,
        dimension_numbers=(((1,), (1,)), ((), ())),
        preferred_element_type=jnp.float32,
    )                       # (TQ, TN) f32
    # scale is a compile-time constant; mb_ref row broadcasts over TQ.
    o_ref[0] = (acc * scale + mb_ref[0]).astype(o_ref.dtype)


def contrastive_embed(visual_feat, prompt_feat, prompt_token_mask,
                      log_scale: float, bias_value: float,
                      *, tq: int = 256, tn: int = 256):
    """visual_feat: [B, Nq, D], prompt_feat: [B, Nt, D], prompt_token_mask: [B, Nt] bool
    -> logits [B, Nq, Nt] f32 (masked positions are -inf)."""
    B, Nq, D = visual_feat.shape
    _, Nt, _ = prompt_feat.shape

    # Tile sizes: Nt tile (lane dim of the output) must be a multiple of 128
    # for lane-dense stores; Nq tile must be a multiple of 8 (sublane).
    TQ = min(tq, _round_up(Nq, 8))
    TN = min(tn, _round_up(Nt, 128))
    Nq_p = _round_up(Nq, TQ)
    Nt_p = _round_up(Nt, TN)

    # bf16 operands for the MXU (f32 accumulation happens inside the kernel).
    v = jnp.pad(visual_feat.astype(jnp.bfloat16),
                ((0, 0), (0, Nq_p - Nq), (0, 0)))
    p = jnp.pad(prompt_feat.astype(jnp.bfloat16),
                ((0, 0), (0, Nt_p - Nt), (0, 0)))

    # Constant-fold exp(log_scale); fuse mask + bias into one additive f32 row:
    # valid token -> bias_value, masked or padded token -> -inf.
    scale = float(math.exp(log_scale))
    mask_p = jnp.pad(prompt_token_mask.astype(bool),
                     ((0, 0), (0, Nt_p - Nt)), constant_values=False)
    mask_bias = jnp.where(mask_p,
                          jnp.float32(bias_value),
                          jnp.float32(-jnp.inf)).reshape(B, 1, Nt_p)

    grid = (B, Nq_p // TQ, Nt_p // TN)

    out = pl.pallas_call(
        functools.partial(_contrastive_embed_kernel, scale=scale),
        out_shape=jax.ShapeDtypeStruct((B, Nq_p, Nt_p), jnp.float32),
        grid=grid,
        in_specs=[
            pl.BlockSpec((1, TQ, D), lambda b, qi, ti: (b, qi, 0)),   # visual tile
            pl.BlockSpec((1, TN, D), lambda b, qi, ti: (b, ti, 0)),   # prompt tile
            pl.BlockSpec((1, 1, TN), lambda b, qi, ti: (b, 0, ti)),   # mask+bias row
        ],
        out_specs=pl.BlockSpec((1, TQ, TN), lambda b, qi, ti: (b, qi, ti)),
        compiler_params=pltpu.CompilerParams(
            dimension_semantics=("parallel", "parallel", "parallel")),
    )(v, p, mask_bias)

    # Drop padding; padded columns were -inf, padded rows are discarded here.
    return out[:, :Nq, :Nt]


if __name__ == "__main__":
    # Module config: log_scale=0.5 (float -> Parameter with exp), bias=True.
    LOG_SCALE = 0.5
    BIAS_VALUE = -math.log((1 - 0.01) / 0.01)

    B, Nq, Nt, D = 2, 16, 8, 32  # batch, visual queries, prompt tokens, hidden

    key = jax.random.PRNGKey(0)
    k1, k2, k3 = jax.random.split(key, 3)
    visual_feat = jax.random.normal(k1, (B, Nq, D), dtype=jnp.float32)
    prompt_feat = jax.random.normal(k2, (B, Nt, D), dtype=jnp.float32)
    prompt_token_mask = jax.random.bernoulli(k3, p=0.75, shape=(B, Nt))

    out = contrastive_embed(visual_feat, prompt_feat, prompt_token_mask,
                            LOG_SCALE, BIAS_VALUE)
    out = jax.block_until_ready(out)

    # Reference with the same bf16-operand / f32-accumulate numerics.
    ref_acc = jnp.einsum("bqd,btd->bqt",
                         visual_feat.astype(jnp.bfloat16),
                         prompt_feat.astype(jnp.bfloat16),
                         preferred_element_type=jnp.float32)
    ref = ref_acc * math.exp(LOG_SCALE) + BIAS_VALUE
    ref = jnp.where(prompt_token_mask[:, None, :], ref, -jnp.inf)

    finite = jnp.isfinite(ref)
    assert bool(jnp.all(jnp.isfinite(out) == finite)), "mask (-inf) pattern mismatch"
    assert bool(jnp.allclose(jnp.where(finite, out, 0.0),
                             jnp.where(finite, ref, 0.0),
                             atol=1e-3, rtol=1e-3)), "value mismatch"

    print("KERNEL_OK")
</pallas_src>

<mosaic_0001>
module attributes {stable_mosaic.version = 11 : i64} {
  func.func @_contrastive_embed_kernel(%arg0: i32, %arg1: i32, %arg2: i32, %arg3: memref<1x16x32xbf16, #tpu.memory_space<vmem>>, %arg4: memref<1x128x32xbf16, #tpu.memory_space<vmem>>, %arg5: memref<1x1x128xf32, #tpu.memory_space<vmem>>, %arg6: memref<1x16x128xf32, #tpu.memory_space<vmem>>) attributes {dimension_semantics = [#tpu.dimension_semantics<parallel>, #tpu.dimension_semantics<parallel>, #tpu.dimension_semantics<parallel>], iteration_bounds = array<i64: 2, 1, 1>, scalar_prefetch = 0 : i64, scratch_operands = 0 : i64, tpu.core_type = #tpu.core_type<tc>, window_params = [{transform_indices = @transform_0, window_bounds = array<i64: 1, 16, 32>}, {transform_indices = @transform_1, window_bounds = array<i64: 1, 128, 32>}, {transform_indices = @transform_2, window_bounds = array<i64: 1, 1, 128>}, {transform_indices = @transform_3, window_bounds = array<i64: 1, 16, 128>}]} {
    %c0 = arith.constant 0 : index
    %c0_0 = arith.constant 0 : index
    %c0_1 = arith.constant 0 : index
    %0 = vector.load %arg3[%c0, %c0_0, %c0_1] : memref<1x16x32xbf16, #tpu.memory_space<vmem>>, vector<1x16x32xbf16>
    %1 = vector.shape_cast %0 : vector<1x16x32xbf16> to vector<16x32xbf16>
    %c0_2 = arith.constant 0 : index
    %c0_3 = arith.constant 0 : index
    %c0_4 = arith.constant 0 : index
    %2 = vector.load %arg4[%c0_2, %c0_3, %c0_4] : memref<1x128x32xbf16, #tpu.memory_space<vmem>>, vector<1x128x32xbf16>
    %3 = vector.shape_cast %2 : vector<1x128x32xbf16> to vector<128x32xbf16>
    %cst = arith.constant dense<0.000000e+00> : vector<16x128xf32>
    %4 = tpu.matmul %1, %3, %cst {dimension_numbers = #tpu.dot_dimension_numbers<[1], [1], [0], [0], [0, 0, 1, 0], [], []>} : vector<16x32xbf16>, vector<128x32xbf16>, vector<16x128xf32> -> vector<16x128xf32>
    %cst_5 = arith.constant 1.64872122 : f32
    %5 = vector.broadcast %cst_5 : f32 to vector<16x128xf32>
    %6 = arith.mulf %4, %5 : vector<16x128xf32>
    %c0_6 = arith.constant 0 : index
    %c0_7 = arith.constant 0 : index
    %c0_8 = arith.constant 0 : index
    %7 = vector.load %arg5[%c0_6, %c0_7, %c0_8] : memref<1x1x128xf32, #tpu.memory_space<vmem>>, vector<1x1x128xf32>
    %8 = vector.shape_cast %7 : vector<1x1x128xf32> to vector<1x128xf32>
    %9 = vector.broadcast %8 : vector<1x128xf32> to vector<16x128xf32>
    %10 = arith.addf %6, %9 : vector<16x128xf32>
    %c0_9 = arith.constant 0 : index
    %c0_10 = arith.constant 0 : index
    %c0_11 = arith.constant 0 : index
    %11 = vector.load %arg6[%c0_9, %c0_10, %c0_11] : memref<1x16x128xf32, #tpu.memory_space<vmem>>, vector<1x16x128xf32>
    %12 = vector.shape_cast %11 : vector<1x16x128xf32> to vector<16x128xf32>
    %13 = vector.shape_cast %10 : vector<16x128xf32> to vector<1x16x128xf32>
    tpu.vector_store %arg6[%c0_9, %c0_10, %c0_11], %13 {strides = array<i32>} : memref<1x16x128xf32, #tpu.memory_space<vmem>>, vector<1x16x128xf32>,
    return
  }
  func.func @transform_0(%arg0: i32, %arg1: i32, %arg2: i32) -> (i32, i32, i32) {
    %c0_i32 = arith.constant 0 : i32
    %c0_i32_0 = arith.constant 0 : i32
    return %arg0, %arg1, %c0_i32 : i32, i32, i32
  }
  func.func @transform_1(%arg0: i32, %arg1: i32, %arg2: i32) -> (i32, i32, i32) {
    %c0_i32 = arith.constant 0 : i32
    %c0_i32_0 = arith.constant 0 : i32
    return %arg0, %arg2, %c0_i32 : i32, i32, i32
  }
  func.func @transform_2(%arg0: i32, %arg1: i32, %arg2: i32) -> (i32, i32, i32) {
    %c0_i32 = arith.constant 0 : i32
    %c0_i32_0 = arith.constant 0 : i32
    return %arg0, %c0_i32, %arg2 : i32, i32, i32
  }
  func.func @transform_3(%arg0: i32, %arg1: i32, %arg2: i32) -> (i32, i32, i32) {
    %c0_i32 = arith.constant 0 : i32
    return %arg0, %arg1, %arg2 : i32, i32, i32
  }
}

</mosaic_0001>

<llo_original>
// kernel: tpu_custom_call.1
$region0: #{tpu_custom_call.1}
  #allocation0 [shape = 'u32[]', space=smem, size = 0x4, offset = 0x4, fixed_abs, tag = 'smem constant byte address 0x4 - core index']
  #allocation1 [shape = 'u32[144,128]{1,0:T(1,128)}', space=vmem, size = 0x12000, scoped, tag = 'internal scratch']
  %s0 = inlined_call_operand.vmem [shape: bf16[2,16,32], index: 0, kind: input, shape index: {}]
  %s1 = inlined_call_operand.vmem [shape: bf16[2,128,32], index: 1, kind: input, shape index: {}]
  %s2 = inlined_call_operand.vmem [shape: f32[2,1,128], index: 2, kind: input, shape index: {}]
  %s3 = inlined_call_operand.hbm [shape: f32[2,16,128], index: 3, kind: output, shape index: {}]
  %s4 = sld [smem:[#allocation0]]
  $region45: #{tpu_custom_call.1} parent=0
    _
  %s6 = ssub.s32 1, %s4
  %s7 = scalar_select 0, %s6, %s4
  $region1: #{tpu_custom_call.1} parent=0
    #allocation2 [shape = 'u8[16384]{0}', space=vmem, size = 0x4000, scoped, tag = 'output window, operand 0']
    #allocation3 [shape = 's32[2]{0}', space=sflag, size = 0x8, scoped, tag = 'scoped memory for tpu_custom_call.1']
    %8 = vsyncpa [#allocation3], 0
    %s9 = scalar_lea.sflag [#allocation3], 1
    %10 = vsyncpa %s9, 0
    loop: start=0, step=1, limit=4
    $region2: #{tpu_custom_call.1} parent=1 // loop_pre_header
      _
    $region3: #{tpu_custom_call.1} parent=1 // loop_header
      %s12 = sphi 0, %s16
      %p13 = scmp.ge.s32.totalorder %s12, 4
      %s19 = sphi 0, %s38
      %s20 = sphi 0, %s34
      %s21 = sphi 0, %s30
      %s22 = sphi 0, %s19
      %s23 = sphi 0, %s20
      %s24 = sphi 0, %s21
      %s25 = sphi 0, %s22
      %s26 = sphi 0, %s23
      %s27 = sphi 0, %s24
      %s43 = sphi 0, %s45
      %s46 = sphi 0, %s43
      %s47 = sphi 0, %s46
      %s63 = sphi 0, %s47
      %s71 = sphi 0, %s73
      %s74 = sphi 0, %s71
      %s75 = sphi 0, %s74
      %s91 = sphi 0, %s75
      %s99 = sphi 0, %s101
      %s102 = sphi 0, %s99
      %s103 = sphi 0, %s102
      %s119 = sphi 0, %s103
      %s129 = sphi 0, %s131
      %s132 = sphi 0, %s129
      %s133 = sphi 0, %s132
      %s149 = sphi 0, %s133
    $region4: #{tpu_custom_call.1} parent=1 // loop_header_branch
      %15 = sbr.rel (%p13) target = $region8
    $region5: #{tpu_custom_call.1} parent=1 // loop_body
      %s17 = ssub.s32 %s12, 1
      %s18 = ssub.s32 %s12, 2
      %s28 = sadd.s32 1, %s21
      %p29 = scmp.ge.s32.totalorder %s28, 1
      %s30 = scalar_select %p29, 0, %s28
      %s31 = sadd.s32 1, %s20
      %s32 = scalar_select %p29, %s31, %s20
      %p33 = scmp.ge.s32.totalorder %s32, 1
      %s34 = scalar_select %p33, 0, %s32
      %s35 = sadd.s32 1, %s19
      %s36 = scalar_select %p33, %s35, %s19
      %p37 = scmp.ge.s32.totalorder %s36, 2
      %s38 = scalar_select %p37, 0, %s36
      %s39 = ssub.s32 %s19, %s38
      %s40 = ssub.s32 %s20, %s34
      %s41 = sor.u32 %s39, %s40
      %p42 = scmp.eq.s32.totalorder %s41, 0
      %s44 = sadd.s32 %s43, 1
      %s45 = scalar_select %p42, %s43, %s44
      %p48 = pneg %p42
      %p49 = scmp.eq.s32.totalorder %s12, 1
      %p50 = por %p48, %p49
      %p51 = scmp.ne.s32.totalorder %s43, %s46
      %p52 = scmp.eq.s32.totalorder %s12, 0
      %p53 = por %p51, %p52
      %p54 = scmp.ne.s32.totalorder %s43, %s46
      %p55 = scmp.eq.s32.totalorder %s17, 1
      %p56 = por %p54, %p55
      %p57 = scmp.ne.s32.totalorder %s46, %s47
      %p58 = scmp.eq.s32.totalorder %s17, 0
      %p59 = por %p57, %p58
      %p60 = scmp.ne.s32.totalorder %s46, %s47
      %p61 = scmp.eq.s32.totalorder %s18, 1
      %p62 = por %p60, %p61
      %p64 = scmp.ne.s32.totalorder %s47, %s63
      %p65 = scmp.eq.s32.totalorder %s18, 0
      %p66 = por %p64, %p65
      %s67 = ssub.s32 %s19, %s38
      %s68 = ssub.s32 %s21, %s30
      %s69 = sor.u32 %s67, %s68
      %p70 = scmp.eq.s32.totalorder %s69, 0
      %s72 = sadd.s32 %s71, 1
      %s73 = scalar_select %p70, %s71, %s72
      %p76 = pneg %p70
      %p77 = scmp.eq.s32.totalorder %s12, 1
      %p78 = por %p76, %p77
      %p79 = scmp.ne.s32.totalorder %s71, %s74
      %p80 = scmp.eq.s32.totalorder %s12, 0
      %p81 = por %p79, %p80
      %p82 = scmp.ne.s32.totalorder %s71, %s74
      %p83 = scmp.eq.s32.totalorder %s17, 1
      %p84 = por %p82, %p83
      %p85 = scmp.ne.s32.totalorder %s74, %s75
      %p86 = scmp.eq.s32.totalorder %s17, 0
      %p87 = por %p85, %p86
      %p88 = scmp.ne.s32.totalorder %s74, %s75
      %p89 = scmp.eq.s32.totalorder %s18, 1
      %p90 = por %p88, %p89
      %p92 = scmp.ne.s32.totalorder %s75, %s91
      %p93 = scmp.eq.s32.totalorder %s18, 0
      %p94 = por %p92, %p93
      %s95 = ssub.s32 %s19, %s38
      %s96 = ssub.s32 %s21, %s30
      %s97 = sor.u32 %s95, %s96
      %p98 = scmp.eq.s32.totalorder %s97, 0
      %s100 = sadd.s32 %s99, 1
      %s101 = scalar_select %p98, %s99, %s100
      %p104 = pneg %p98
      %p105 = scmp.eq.s32.totalorder %s12, 1
      %p106 = por %p104, %p105
      %p107 = scmp.ne.s32.totalorder %s99, %s102
      %p108 = scmp.eq.s32.totalorder %s12, 0
      %p109 = por %p107, %p108
      %p110 = scmp.ne.s32.totalorder %s99, %s102
      %p111 = scmp.eq.s32.totalorder %s17, 1
      %p112 = por %p110, %p111
      %p113 = scmp.ne.s32.totalorder %s102, %s103
      %p114 = scmp.eq.s32.totalorder %s17, 0
      %p115 = por %p113, %p114
      %p116 = scmp.ne.s32.totalorder %s102, %s103
      %p117 = scmp.eq.s32.totalorder %s18, 1
      %p118 = por %p116, %p117
      %p120 = scmp.ne.s32.totalorder %s103, %s119
      %p121 = scmp.eq.s32.totalorder %s18, 0
      %p122 = por %p120, %p121
      %s123 = ssub.s32 %s19, %s38
      %s124 = ssub.s32 %s20, %s34
      %s125 = sor.u32 %s123, %s124
      %s126 = ssub.s32 %s21, %s30
      %s127 = sor.u32 %s125, %s126
      %p128 = scmp.eq.s32.totalorder %s127, 0
      %s130 = sadd.s32 %s129, 1
      %s131 = scalar_select %p128, %s129, %s130
      %p134 = pneg %p128
      %p135 = scmp.eq.s32.totalorder %s12, 1
      %p136 = por %p134, %p135
      %p137 = scmp.ne.s32.totalorder %s129, %s132
      %p138 = scmp.eq.s32.totalorder %s12, 0
      %p139 = por %p137, %p138
      %p140 = scmp.ne.s32.totalorder %s129, %s132
      %p141 = scmp.eq.s32.totalorder %s17, 1
      %p142 = por %p140, %p141
      %p143 = scmp.ne.s32.totalorder %s132, %s133
      %p144 = scmp.eq.s32.totalorder %s17, 0
      %p145 = por %p143, %p144
      %p146 = scmp.ne.s32.totalorder %s132, %s133
      %p147 = scmp.eq.s32.totalorder %s18, 1
      %p148 = por %p146, %p147
      %p150 = scmp.ne.s32.totalorder %s133, %s149
      %p151 = scmp.eq.s32.totalorder %s18, 0
      %p152 = por %p150, %p151
      %p153 = scmp.le.s32.totalorder 1, %s12
      %p154 = scmp.lt.s32.totalorder %s12, 3
      %p155 = pnand %p153, %p154
      %p156 = pneg %p155
      // Predicated region
      $region9: #{tpu_custom_call.1} parent=5 // pred_check
        _
      $region10: #{tpu_custom_call.1} parent=5 // pred_check_branch
        %158 = sbr.rel (%p155) target = $region12
      $region11: #{tpu_custom_call.1} parent=5 // pred_region
        %s159 = ssub.s32 %s12, 1
      $region12: #{tpu_custom_call.1} parent=5 // pred_fallthru
        _
      %p160 = scmp.lt.s32.totalorder %s12, 2
      // Predicated region
      $region13: #{tpu_custom_call.1} parent=5 // pred_check
        %p161 = pneg %p160
      $region14: #{tpu_custom_call.1} parent=5 // pred_check_branch
        %163 = sbr.rel (%p161) target = $region16
      $region15: #{tpu_custom_call.1} parent=5 // pred_region
        // Predicated region
        $region17: #{tpu_custom_call.1} parent=15 // pred_check
          %p164 = pneg %p53
        $region18: #{tpu_custom_call.1} parent=15 // pred_check_branch
          %166 = sbr.rel (%p164) target = $region20
        $region19: #{tpu_custom_call.1} parent=15 // pred_region
          %s167 = smul.u32 2, %s20
          %p168 = scmp.lt.s32.totalorder %s19, 1
          %s169 = scalar_select %p168, %s19, 1
          %p170 = scmp.lt.s32.totalorder %s167, 1
          %s171 = scalar_select %p170, %s167, 1
          %s172 = smul.addr %s169, 2
          %s173 = sadd.s32 %s171, %s172
          %s174 = smul.addr %s173, 4
          %s175 = scalar_lea.vmem %s0, %s174
          %s176 = smul.u32 2, %s20
        $region20: #{tpu_custom_call.1} parent=15 // pred_fallthru
          _
        // Predicated region
        $region21: #{tpu_custom_call.1} parent=15 // pred_check
          %p177 = pneg %p81
        $region22: #{tpu_custom_call.1} parent=15 // pred_check_branch
          %179 = sbr.rel (%p177) target = $region24
        $region23: #{tpu_custom_call.1} parent=15 // pred_region
          %s180 = smul.u32 16, %s21
          %p181 = scmp.lt.s32.totalorder %s19, 1
          %s182 = scalar_select %p181, %s19, 1
          %p183 = scmp.lt.s32.totalorder %s180, 15
          %s184 = scalar_select %p183, %s180, 15
          %s185 = smul.addr %s182, 16
          %s186 = sadd.s32 %s184, %s185
          %s187 = smul.addr %s186, 4
          %s188 = scalar_lea.vmem %s1, %s187
          %s189 = smul.u32 16, %s21
        $region24: #{tpu_custom_call.1} parent=15 // pred_fallthru
          _
        // Predicated region
        $region25: #{tpu_custom_call.1} parent=15 // pred_check
          %p190 = pneg %p109
        $region26: #{tpu_custom_call.1} parent=15 // pred_check_branch
          %192 = sbr.rel (%p190) target = $region28
        $region27: #{tpu_custom_call.1} parent=15 // pred_region
          %p193 = scmp.lt.s32.totalorder %s19, 1
          %s194 = scalar_select %p193, %s19, 1
          %p195 = scmp.lt.s32.totalorder %s21, 0
          %s196 = scalar_select %p195, %s21, 0
          %s197 = sadd.s32 %s196, %s194
          %s198 = scalar_lea.vmem %s2, %s197
        $region28: #{tpu_custom_call.1} parent=15 // pred_fallthru
          _
      $region16: #{tpu_custom_call.1} parent=5 // pred_fallthru
        _
      %p199 = scmp.le.s32.totalorder 1, %s12
      %p200 = scmp.lt.s32.totalorder %s12, 3
      %p201 = pnand %p199, %p200
      %p202 = pneg %p201
      // Predicated region
      $region29: #{tpu_custom_call.1} parent=5 // pred_check
        _
      $region30: #{tpu_custom_call.1} parent=5 // pred_check_branch
        %204 = sbr.rel (%p201) target = $region32
      $region31: #{tpu_custom_call.1} parent=5 // pred_region
        %s205 = ssub.s32 %s12, 1
        %s206 = smul.u32 2, %s23
        %p207 = scmp.lt.s32.totalorder %s22, 1
        %s208 = scalar_select %p207, %s22, 1
        %p209 = scmp.lt.s32.totalorder %s206, 1
        %s210 = scalar_select %p209, %s206, 1
        %s211 = smul.addr %s208, 2
        %s212 = sadd.s32 %s210, %s211
        %s213 = smul.addr %s212, 4
        %s214 = scalar_lea.vmem %s0, %s213
        %p215 = pneg %p59
        %p216 = pneg %p56
        %s217 = smul.u32 16, %s24
        %p218 = scmp.lt.s32.totalorder %s22, 1
        %s219 = scalar_select %p218, %s22, 1
        %p220 = scmp.lt.s32.totalorder %s217, 15
        %s221 = scalar_select %p220, %s217, 15
        %s222 = smul.addr %s219, 16
        %s223 = sadd.s32 %s221, %s222
        %s224 = smul.addr %s223, 4
        %s225 = scalar_lea.vmem %s1, %s224
        %p226 = pneg %p87
        %p227 = pneg %p84
        %p228 = scmp.lt.s32.totalorder %s22, 1
        %s229 = scalar_select %p228, %s22, 1
        %p230 = scmp.lt.s32.totalorder %s24, 0
        %s231 = scalar_select %p230, %s24, 0
        %s232 = sadd.s32 %s231, %s229
        %s233 = scalar_lea.vmem %s2, %s232
        %p234 = pneg %p115
        %p235 = pneg %p112
        %p236 = pneg %p145
        %p237 = pneg %p142
        %s238 = sand.u32 %s132, 1
        %s239 = scalar_lea.sflag [#allocation3], %s238
        %s240 = sand.u32 %s132, 1
        %s241 = smul.addr %s240, 16
        %s242 = scalar_lea.vmem [#allocation2], %s241
        %s243 = smul.u32 2, %s23
        %p244 = scmp.lt.s32.totalorder %s22, 1
        %s245 = scalar_select %p244, %s22, 1
        %p246 = scmp.lt.s32.totalorder %s243, 1
        %s247 = scalar_select %p246, %s243, 1
        %s248 = smul.addr %s245, 2
        %s249 = sadd.s32 %s247, %s248
        %s250 = smul.addr %s249, 4
        %s251 = scalar_lea.vmem %s0, %s250
        %s252 = smul.u32 2, %s23
        %s253 = smul.u32 16, %s24
        %p254 = scmp.lt.s32.totalorder %s22, 1
        %s255 = scalar_select %p254, %s22, 1
        %p256 = scmp.lt.s32.totalorder %s253, 15
        %s257 = scalar_select %p256, %s253, 15
        %s258 = smul.addr %s255, 16
        %s259 = sadd.s32 %s257, %s258
        %s260 = smul.addr %s259, 4
        %s261 = scalar_lea.vmem %s1, %s260
        %s262 = smul.u32 16, %s24
        %p263 = scmp.lt.s32.totalorder %s22, 1
        %s264 = scalar_select %p263, %s22, 1
        %p265 = scmp.lt.s32.totalorder %s24, 0
        %s266 = scalar_select %p265, %s24, 0
        %s267 = sadd.s32 %s266, %s264
        %s268 = scalar_lea.vmem %s2, %s267
        %s269 = smul.u32 2, %s23
        %v271 = vld [vmem:[%s251] sm:$0xf]
        %v272 = vld [vmem:[%s251 + $0x4] sm:$0xf]
        %v273 = vld [vmem:[%s261] sm:$0xf]
        %v274 = vld [vmem:[%s261 + $0x4] sm:$0xf]
        %v275 = vld [vmem:[%s261 + $0x8] sm:$0xf]
        %v276 = vld [vmem:[%s261 + $0xc] sm:$0xf]
        %v277 = vld [vmem:[%s261 + $0x10] sm:$0xf]
        %v278 = vld [vmem:[%s261 + $0x14] sm:$0xf]
        %v279 = vld [vmem:[%s261 + $0x18] sm:$0xf]
        %v280 = vld [vmem:[%s261 + $0x1c] sm:$0xf]
        %v281 = vld [vmem:[%s261 + $0x20] sm:$0xf]
        %v282 = vld [vmem:[%s261 + $0x24] sm:$0xf]
        %v283 = vld [vmem:[%s261 + $0x28] sm:$0xf]
        %v284 = vld [vmem:[%s261 + $0x2c] sm:$0xf]
        %v285 = vld [vmem:[%s261 + $0x30] sm:$0xf]
        %v286 = vld [vmem:[%s261 + $0x34] sm:$0xf]
        %v287 = vld [vmem:[%s261 + $0x38] sm:$0xf]
        %v288 = vld [vmem:[%s261 + $0x3c] sm:$0xf]
        %v291 = vunpack.c.l.b16 %v271
        %v292 = vunpack.c.l.b16 %v272
        %v293 = vpack.c.b16 %v292, %v291
        %v310 = vunpack.c.l.b16 %v273
        %v311 = vunpack.c.l.b16 %v274
        %v312 = vunpack.c.l.b16 %v275
        %v313 = vunpack.c.l.b16 %v276
        %v314 = vunpack.c.l.b16 %v277
        %v315 = vunpack.c.l.b16 %v278
        %v316 = vunpack.c.l.b16 %v279
        %v317 = vunpack.c.l.b16 %v280
        %v318 = vunpack.c.l.b16 %v281
        %v319 = vunpack.c.l.b16 %v282
        %v320 = vunpack.c.l.b16 %v283
        %v321 = vunpack.c.l.b16 %v284
        %v322 = vunpack.c.l.b16 %v285
        %v323 = vunpack.c.l.b16 %v286
        %v324 = vunpack.c.l.b16 %v287
        %v325 = vunpack.c.l.b16 %v288
        %v326 = vpack.c.b16 %v311, %v310
        %v327 = vpack.c.b16 %v313, %v312
        %v328 = vpack.c.b16 %v315, %v314
        %v329 = vpack.c.b16 %v317, %v316
        %v330 = vpack.c.b16 %v319, %v318
        %v331 = vpack.c.b16 %v321, %v320
        %v332 = vpack.c.b16 %v323, %v322
        %v333 = vpack.c.b16 %v325, %v324
        %vm334 = vcmask 261120
        %v336 = vsel %vm334, %v293, 0
        %v339 = vsel %vm334, %v326, 0
        %v342 = vsel %vm334, %v327, 0
        %v345 = vsel %vm334, %v328, 0
        %v348 = vsel %vm334, %v329, 0
        %v351 = vsel %vm334, %v330, 0
        %v354 = vsel %vm334, %v331, 0
        %v357 = vsel %vm334, %v332, 0
        %v360 = vsel %vm334, %v333, 0
        %362 = vmatprep.subr.bf16.mxu0 0
        %363 = vmatpush1.bf16.xpose.msra.mxu0 %v360
        %364 = vmatprep.subr.bf16.mxu0 0
        %365 = vmatpush1.bf16.xpose.msra.mxu0 %v357
        %366 = vmatprep.subr.bf16.mxu0 0
        %367 = vmatpush1.bf16.xpose.msra.mxu0 %v354
        %368 = vmatprep.subr.bf16.mxu0 0
        %369 = vmatpush1.bf16.xpose.msra.mxu0 %v351
        %370 = vmatprep.subr.bf16.mxu0 0
        %371 = vmatpush1.bf16.xpose.msra.mxu0 %v348
        %372 = vmatprep.subr.bf16.mxu0 0
        %373 = vmatpush1.bf16.xpose.msra.mxu0 %v345
        %374 = vmatprep.subr.bf16.mxu0 0
        %375 = vmatpush1.bf16.xpose.msra.mxu0 %v342
        %376 = vmatprep.subr.bf16.mxu0 0
        %377 = vmatpush1.bf16.xpose.msra.mxu0 %v339
        %378 = vmatprep.subr.bf16.mxu0 0
        %379 = vmatpush2.bf16.xpose.msra.mxu0 0
        %380 = vmatprep.subr.bf16.mxu0 0
        %381 = vmatpush2.bf16.xpose.msra.mxu0 0
        %382 = vmatprep.subr.bf16.mxu0 0
        %383 = vmatpush2.bf16.xpose.msra.mxu0 0
        %384 = vmatprep.subr.bf16.mxu0 0
        %385 = vmatpush2.bf16.xpose.msra.mxu0 0
        %386 = vmatprep.subr.bf16.mxu0 0
        %387 = vmatpush2.bf16.xpose.msra.mxu0 0
        %388 = vmatprep.subr.bf16.mxu0 0
        %389 = vmatpush2.bf16.xpose.msra.mxu0 0
        %390 = vmatprep.subr.bf16.mxu0 0
        %391 = vmatpush2.bf16.xpose.msra.mxu0 0
        %392 = vmatprep.subr.bf16.mxu0 0
        %393 = vmatpush2.bf16.xpose.msra.mxu0 0
        %394 = vmatprep.mubr.bf16.mxu0 0
        %395 = vmatmul.mubr.bf16.gmra.mxu0 %v336
        %v396 = vpop.f32.mrf.mxu0
        %v397 = vadd.f32 0.0, %v396
        %v398 = vpop.f32.mrf.mxu0
        %v399 = vpop.f32.mrf.mxu0
        %v400 = vadd.f32 0.0, %v399
        %v401 = vpop.f32.mrf.mxu0
        %402 = vdwg.mxu0
        %v403 = vmul.f32 %v397, 1.6487212
        %v404 = vmul.f32 %v400, 1.6487212
        %v405 = vld [vmem:[%s268] sm:$0x1]
        %v407 = vlaneseq
        %v408 = vshrl.u32 %v407, 7
        %v409 = vsub.s32 0, %v408
        %v410 = vrot.slane %v405, %v409
        %v412 = vadd.f32 %v403, %v410
        %v413 = vadd.f32 %v404, %v410
        %414 = vst [vmem:[%s242] sm:$0xff] %v412
        %415 = vst [vmem:[%s242 + $0x8] sm:$0xff] %v413
        %s416 = sand.u32 %s132, 1
        %s417 = scalar_lea.sflag [#allocation3], %s416
        %s418 = sand.u32 %s132, 1
        %s419 = smul.addr %s418, 16
        %s420 = scalar_lea.vmem [#allocation2], %s419
        // Predicated region
        $region33: #{tpu_custom_call.1} parent=31 // pred_check
          %p421 = pneg %p142
        $region34: #{tpu_custom_call.1} parent=31 // pred_check_branch
          %423 = sbr.rel (%p421) target = $region36
        $region35: #{tpu_custom_call.1} parent=31 // pred_region
          %s424 = smul.u32 2, %s23
          %s426 = ssub.s32 256, 256
          %427 = vsyncadd %s417, %s426
          %s428 = sadd.s32 %s24, %s424
          %s429 = smul.addr %s22, 2
          %s430 = sadd.s32 %s428, %s429
          %s431 = smul.addr %s430, 128
          %s432 = scalar_lea.hbm %s3, %s431
          %s433 = sshll.u32 %s420, 4
          %s434 = int_to_ptr.vmem [resolvable:$true] %s433
          %439 = dma.vmem_to_hbm [thread:$0]  %s434, 256, %s432, %s417, 128, 128, 8
        $region36: #{tpu_custom_call.1} parent=31 // pred_fallthru
          _
      $region32: #{tpu_custom_call.1} parent=5 // pred_fallthru
        _
      %p440 = scmp.le.s32.totalorder 2, %s12
      // Predicated region
      $region37: #{tpu_custom_call.1} parent=5 // pred_check
        %p441 = pneg %p440
      $region38: #{tpu_custom_call.1} parent=5 // pred_check_branch
        %443 = sbr.rel (%p441) target = $region40
      $region39: #{tpu_custom_call.1} parent=5 // pred_region
        %s444 = ssub.s32 %s12, 2
        // Predicated region
        $region41: #{tpu_custom_call.1} parent=39 // pred_check
          %p445 = pneg %p148
        $region42: #{tpu_custom_call.1} parent=39 // pred_check_branch
          %447 = sbr.rel (%p445) target = $region44
        $region43: #{tpu_custom_call.1} parent=39 // pred_region
          %s448 = sand.u32 %s133, 1
          %s449 = scalar_lea.sflag [#allocation3], %s448
          %s450 = sand.u32 %s133, 1
          %s451 = smul.addr %s450, 16
          %s452 = scalar_lea.vmem [#allocation2], %s451
          %453 = dma.done %s449, 256
        $region44: #{tpu_custom_call.1} parent=39 // pred_fallthru
          _
      $region40: #{tpu_custom_call.1} parent=5 // pred_fallthru
        _
    $region6: #{tpu_custom_call.1} parent=1 // loop_footer
      %s16 = sadd.s32 1, %s12
    $region7: #{tpu_custom_call.1} parent=1 // loop_footer_branch
      %11 = sbr.rel target = $region3
    $region8: #{tpu_custom_call.1} parent=1 // loop_exit
      _
    %454 = vsyncpa [#allocation3], 1
    %s455 = scalar_lea.sflag [#allocation3], 1
    %456 = vsyncpa %s455, 1

</llo_original>
